<compile_context>
chip_gen: v7x
topology: tpu7x:2x2x1
jax: 0.10.0
libtpu: 0.0.40
codegen_flags: <defaults>
</compile_context>

<pallas_src>
import functools
import math

import jax
import jax.numpy as jnp
from jax.experimental import pallas as pl
from jax.experimental.pallas import tpu as pltpu

# -log(clamp_min of the one-hot) = -log(1e-4), folded at trace time.
_NEG_LOG_CLIP = -math.log(1e-4)


def _rce_kernel(pred_ref, labels_ref, out_ref, *, n_rows, block_rows):
    i = pl.program_id(0)

    x = pred_ref[...].astype(jnp.float32)               # (TN, C) f32 compute
    labels = labels_ref[...]                             # (TN, 1) int32
    tn, c = x.shape

    # Numerically stable softmax over the class (lane) axis.
    # Per-row reciprocal (EUP) instead of a (TN, C) elementwise divide.
    m = jnp.max(x, axis=1, keepdims=True)
    e = jnp.exp(x - m)
    inv = pl.reciprocal(jnp.sum(e, axis=1, keepdims=True))
    # Upper clamp of the reference is redundant (softmax <= 1): floor only.
    sm = jnp.maximum(e * inv, 1e-7)                       # (TN, C)

    # rce_row = -sum(sm * log(clip(onehot, 1e-4, 1)))
    #         = -log(1e-4) * sum_{j != label} sm[j]       (single fused reduce)
    col = jax.lax.broadcasted_iota(jnp.int32, (tn, c), 1)
    off_label = jnp.where(col != labels, sm, 0.0)
    rce = _NEG_LOG_CLIP * jnp.sum(off_label, axis=1, keepdims=True)  # (TN, 1)

    # Mask rows of the (possibly partial) last tile so padded garbage (even
    # NaN) cannot leak into the final mean.
    row = jax.lax.broadcasted_iota(jnp.int32, (tn, 1), 0)
    valid = (i * block_rows + row) < n_rows
    out_ref[...] = jnp.where(valid, rce, 0.0)


def reverse_cross_entropy(pred, labels, num_classes, scale=1.0,
                          block_rows=None,
                          vmem_budget_bytes=16 * 1024 * 1024):
    """pred: (N, C) float (any float dtype); labels: (N,) int. Scalar f32 loss."""
    n, c = pred.shape
    assert c == num_classes
    # Labels as an (N, 1) int32 column so the one-hot select can be built with
    # a lane-axis broadcasted_iota compare inside the kernel.
    labels2d = labels.reshape(n, 1).astype(jnp.int32)

    itemsize = jnp.dtype(pred.dtype).itemsize
    # Dtype-aware sublane multiple: (8,128) f32, (16,128) bf16, (32,128) int8.
    row_mult = {4: 8, 2: 16, 1: 32}.get(itemsize, 8)

    # VMEM-budget-driven row tile:
    #   2 x TN x C x itemsize   double-buffered pred input tile
    #   3 x TN x C x 4          f32 compute temporaries (x, e/sm, select)
    #   2 x TN x 128 x 4        double-buffered labels tile (lane-padded)
    bytes_per_row = 2 * c * itemsize + 3 * c * 4 + 2 * 128 * 4
    if block_rows is None:
        tn = max(row_mult, min(2048, vmem_budget_bytes // bytes_per_row))
        tn = (tn // row_mult) * row_mult
    else:
        tn = block_rows
    if n <= tn:
        tn = n   # full-array block is always a legal block shape
    else:
        assert tn % row_mult == 0, (
            f"row tile ({tn}) must be a multiple of {row_mult} for itemsize {itemsize}")
    grid = (pl.cdiv(n, tn),)

    cost = pl.CostEstimate(
        flops=6 * n * c,
        transcendentals=n * c + n,
        bytes_accessed=n * c * itemsize + n * 4 + n * 4,
    )

    rce_rows = pl.pallas_call(
        functools.partial(_rce_kernel, n_rows=n, block_rows=tn),
        out_shape=jax.ShapeDtypeStruct((n, 1), jnp.float32),
        grid=grid,
        in_specs=[
            pl.BlockSpec((tn, c), lambda i: (i, 0)),    # pred, native dtype
            pl.BlockSpec((tn, 1), lambda i: (i, 0)),    # labels column
        ],
        # Per-tile independent output blocks -> row axis is truly parallel
        # (lets both v7x TensorCores stream tiles; harmless on 1-TC chips).
        out_specs=pl.BlockSpec((tn, 1), lambda i: (i, 0)),
        compiler_params=pltpu.CompilerParams(
            dimension_semantics=("parallel",),
            vmem_limit_bytes=32 * 1024 * 1024,
        ),
        cost_estimate=cost,
    )(pred, labels2d)

    # Tiny final reduction (N f32 values) in the wrapper.
    return jnp.sum(rce_rows) * jnp.float32(scale / n)


def _reference(pred, labels, num_classes, scale=1.0):
    sm = jax.nn.softmax(pred.astype(jnp.float32), axis=1)
    sm = jnp.clip(sm, 1e-7, 1.0)
    oh = jax.nn.one_hot(labels, num_classes, dtype=jnp.float32)
    oh = jnp.clip(oh, 1e-4, 1.0)
    rce = -jnp.sum(sm * jnp.log(oh), axis=1)
    return scale * jnp.mean(rce)


if __name__ == "__main__":
    num_classes = 16
    batch = 12          # not a multiple of the row tile -> exercises masking
    scale = 1.0

    key = jax.random.PRNGKey(0)
    kp, kl = jax.random.split(key)
    pred = jax.random.normal(kp, (batch, num_classes), dtype=jnp.float32)
    labels = jax.random.randint(kl, (batch,), 0, num_classes, dtype=jnp.int32)

    # Small explicit row tile (8) -> 2 grid steps, last tile partial.
    loss = reverse_cross_entropy(
        pred, labels, num_classes, scale=scale, block_rows=8
    )
    loss = jax.block_until_ready(loss)

    ref = _reference(pred, labels, num_classes, scale=scale)
    assert jnp.allclose(loss, ref, rtol=1e-5, atol=1e-5), (loss, ref)

    # Also exercise the budget-derived tile path (single full-batch block).
    loss2 = jax.block_until_ready(
        reverse_cross_entropy(pred, labels, num_classes, scale=scale))
    assert jnp.allclose(loss2, ref, rtol=1e-5, atol=1e-5), (loss2, ref)

    print("KERNEL_OK")
</pallas_src>

<mosaic_0001>
module attributes {stable_mosaic.version = 11 : i64} {
  func.func @_rce_kernel(%arg0: i32, %arg1: memref<8x16xf32, #tpu.memory_space<vmem>>, %arg2: memref<8x1xi32, #tpu.memory_space<vmem>>, %arg3: memref<8x1xf32, #tpu.memory_space<vmem>>) attributes {dimension_semantics = [#tpu.dimension_semantics<parallel>], iteration_bounds = array<i64: 2>, scalar_prefetch = 0 : i64, scratch_operands = 0 : i64, tpu.core_type = #tpu.core_type<tc>, window_params = [{transform_indices = @transform_0, window_bounds = array<i64: 8, 16>}, {transform_indices = @transform_1, window_bounds = array<i64: 8, 1>}, {transform_indices = @transform_2, window_bounds = array<i64: 8, 1>}]} {
    %c0 = arith.constant 0 : index
    %c0_0 = arith.constant 0 : index
    %0 = vector.load %arg1[%c0, %c0_0] : memref<8x16xf32, #tpu.memory_space<vmem>>, vector<8x16xf32>
    %c0_1 = arith.constant 0 : index
    %c0_2 = arith.constant 0 : index
    %1 = vector.load %arg2[%c0_1, %c0_2] : memref<8x1xi32, #tpu.memory_space<vmem>>, vector<8x1xi32>
    %cst = arith.constant dense<0xFF800000> : vector<8xf32>
    %2 = vector.multi_reduction <maximumf>, %0, %cst [1] : vector<8x16xf32> to vector<8xf32>
    %3 = vector.shape_cast %2 : vector<8xf32> to vector<8x1xf32>
    %4 = vector.broadcast %3 : vector<8x1xf32> to vector<8x16xf32>
    %5 = arith.subf %0, %4 : vector<8x16xf32>
    %6 = math.exp %5 : vector<8x16xf32>
    %cst_3 = arith.constant dense<0.000000e+00> : vector<8xf32>
    %7 = vector.multi_reduction <add>, %6, %cst_3 [1] : vector<8x16xf32> to vector<8xf32>
    %8 = vector.shape_cast %7 : vector<8xf32> to vector<8x1xf32>
    %9 = tpu.reciprocal %8 : vector<8x1xf32> -> vector<8x1xf32>
    %10 = vector.broadcast %9 : vector<8x1xf32> to vector<8x16xf32>
    %11 = arith.mulf %6, %10 : vector<8x16xf32>
    %cst_4 = arith.constant 1.000000e-07 : f32
    %12 = vector.broadcast %cst_4 : f32 to vector<8x16xf32>
    %13 = arith.maximumf %11, %12 : vector<8x16xf32>
    %14 = tpu.iota {dimensions = array<i32: 1>} : vector<8x16xi32>
    %15 = vector.broadcast %1 : vector<8x1xi32> to vector<8x16xi32>
    %16 = arith.cmpi ne, %14, %15 : vector<8x16xi32>
    %cst_5 = arith.constant 0.000000e+00 : f32
    %17 = vector.broadcast %cst_5 : f32 to vector<8x16xf32>
    %18 = arith.select %16, %13, %17 : vector<8x16xi1>, vector<8x16xf32>
    %cst_6 = arith.constant dense<0.000000e+00> : vector<8xf32>
    %19 = vector.multi_reduction <add>, %18, %cst_6 [1] : vector<8x16xf32> to vector<8xf32>
    %20 = vector.shape_cast %19 : vector<8xf32> to vector<8x1xf32>
    %cst_7 = arith.constant 9.21034049 : f32
    %21 = vector.broadcast %cst_7 : f32 to vector<8x1xf32>
    %22 = arith.mulf %21, %20 : vector<8x1xf32>
    %23 = tpu.iota {dimensions = array<i32: 0>} : vector<8x1xi32>
    %c8_i32 = arith.constant 8 : i32
    %24 = arith.muli %arg0, %c8_i32 : i32
    %25 = vector.broadcast %24 : i32 to vector<8x1xi32>
    %26 = arith.addi %25, %23 : vector<8x1xi32>
    %c12_i32 = arith.constant 12 : i32
    %27 = vector.broadcast %c12_i32 : i32 to vector<8x1xi32>
    %28 = arith.cmpi slt, %26, %27 : vector<8x1xi32>
    %cst_8 = arith.constant 0.000000e+00 : f32
    %29 = vector.broadcast %cst_8 : f32 to vector<8x1xf32>
    %30 = arith.select %28, %22, %29 : vector<8x1xi1>, vector<8x1xf32>
    %c0_9 = arith.constant 0 : index
    %c0_10 = arith.constant 0 : index
    %31 = vector.load %arg3[%c0_9, %c0_10] : memref<8x1xf32, #tpu.memory_space<vmem>>, vector<8x1xf32>
    tpu.vector_store %arg3[%c0_9, %c0_10], %30 {strides = array<i32>} : memref<8x1xf32, #tpu.memory_space<vmem>>, vector<8x1xf32>,
    return
  }
  func.func @transform_0(%arg0: i32) -> (i32, i32) {
    %c0_i32 = arith.constant 0 : i32
    %c0_i32_0 = arith.constant 0 : i32
    return %arg0, %c0_i32 : i32, i32
  }
  func.func @transform_1(%arg0: i32) -> (i32, i32) {
    %c0_i32 = arith.constant 0 : i32
    %c0_i32_0 = arith.constant 0 : i32
    return %arg0, %c0_i32 : i32, i32
  }
  func.func @transform_2(%arg0: i32) -> (i32, i32) {
    %c0_i32 = arith.constant 0 : i32
    %c0_i32_0 = arith.constant 0 : i32
    return %arg0, %c0_i32 : i32, i32
  }
}

</mosaic_0001>

<llo_original>
// kernel: tpu_custom_call.1
$region0: #{tpu_custom_call.1}
  #allocation0 [shape = 'u32[]', space=smem, size = 0x4, offset = 0x4, fixed_abs, tag = 'smem constant byte address 0x4 - core index']
  #allocation1 [shape = 'u32[144,128]{1,0:T(1,128)}', space=vmem, size = 0x12000, scoped, tag = 'internal scratch']
  %s0 = inlined_call_operand.vmem [shape: f32[12,16], index: 0, kind: input, shape index: {}]
  %s1 = inlined_call_operand.vmem [shape: s32[12,1], index: 1, kind: input, shape index: {}]
  %s2 = inlined_call_operand.vmem [shape: f32[12,1], index: 2, kind: output, shape index: {}]
  %s3 = sld [smem:[#allocation0]]
  $region41: #{tpu_custom_call.1} parent=0
    _
  %s5 = ssub.s32 1, %s3
  %s6 = scalar_select 0, %s5, %s3
  loop: start=0, step=1, limit=4
  $region2: #{tpu_custom_call.1} parent=0 // loop_pre_header
    _
  $region3: #{tpu_custom_call.1} parent=0 // loop_header
    %s8 = sphi 0, %s12
    %p9 = scmp.ge.s32.totalorder %s8, 4
    %s18 = sphi 0, %s20
    %s21 = sphi 0, %s18
    %s22 = sphi 0, %s21
    %s38 = sphi 0, %s22
    %s44 = sphi 0, %s46
    %s47 = sphi 0, %s44
    %s48 = sphi 0, %s47
    %s64 = sphi 0, %s48
    %s70 = sphi 0, %s72
    %s73 = sphi 0, %s70
    %s74 = sphi 0, %s73
    %s90 = sphi 0, %s74
  $region4: #{tpu_custom_call.1} parent=0 // loop_header_branch
    %11 = sbr.rel (%p9) target = $region8
  $region5: #{tpu_custom_call.1} parent=0 // loop_body
    %s13 = ssub.s32 %s8, 1
    %s14 = ssub.s32 %s8, 2
    %s15 = sadd.s32 %s8, 1
    %s16 = ssub.s32 %s8, %s15
    %p17 = scmp.eq.s32.totalorder %s16, 0
    %s19 = sadd.s32 %s18, 1
    %s20 = scalar_select %p17, %s18, %s19
    %p23 = pneg %p17
    %p24 = scmp.eq.s32.totalorder %s8, 1
    %p25 = por %p23, %p24
    %p26 = scmp.ne.s32.totalorder %s18, %s21
    %p27 = scmp.eq.s32.totalorder %s8, 0
    %p28 = por %p26, %p27
    %p29 = scmp.ne.s32.totalorder %s18, %s21
    %p30 = scmp.eq.s32.totalorder %s13, 1
    %p31 = por %p29, %p30
    %p32 = scmp.ne.s32.totalorder %s21, %s22
    %p33 = scmp.eq.s32.totalorder %s13, 0
    %p34 = por %p32, %p33
    %p35 = scmp.ne.s32.totalorder %s21, %s22
    %p36 = scmp.eq.s32.totalorder %s14, 1
    %p37 = por %p35, %p36
    %p39 = scmp.ne.s32.totalorder %s22, %s38
    %p40 = scmp.eq.s32.totalorder %s14, 0
    %p41 = por %p39, %p40
    %s42 = ssub.s32 %s8, %s15
    %p43 = scmp.eq.s32.totalorder %s42, 0
    %s45 = sadd.s32 %s44, 1
    %s46 = scalar_select %p43, %s44, %s45
    %p49 = pneg %p43
    %p50 = scmp.eq.s32.totalorder %s8, 1
    %p51 = por %p49, %p50
    %p52 = scmp.ne.s32.totalorder %s44, %s47
    %p53 = scmp.eq.s32.totalorder %s8, 0
    %p54 = por %p52, %p53
    %p55 = scmp.ne.s32.totalorder %s44, %s47
    %p56 = scmp.eq.s32.totalorder %s13, 1
    %p57 = por %p55, %p56
    %p58 = scmp.ne.s32.totalorder %s47, %s48
    %p59 = scmp.eq.s32.totalorder %s13, 0
    %p60 = por %p58, %p59
    %p61 = scmp.ne.s32.totalorder %s47, %s48
    %p62 = scmp.eq.s32.totalorder %s14, 1
    %p63 = por %p61, %p62
    %p65 = scmp.ne.s32.totalorder %s48, %s64
    %p66 = scmp.eq.s32.totalorder %s14, 0
    %p67 = por %p65, %p66
    %s68 = ssub.s32 %s8, %s15
    %p69 = scmp.eq.s32.totalorder %s68, 0
    %s71 = sadd.s32 %s70, 1
    %s72 = scalar_select %p69, %s70, %s71
    %p75 = pneg %p69
    %p76 = scmp.eq.s32.totalorder %s8, 1
    %p77 = por %p75, %p76
    %p78 = scmp.ne.s32.totalorder %s70, %s73
    %p79 = scmp.eq.s32.totalorder %s8, 0
    %p80 = por %p78, %p79
    %p81 = scmp.ne.s32.totalorder %s70, %s73
    %p82 = scmp.eq.s32.totalorder %s13, 1
    %p83 = por %p81, %p82
    %p84 = scmp.ne.s32.totalorder %s73, %s74
    %p85 = scmp.eq.s32.totalorder %s13, 0
    %p86 = por %p84, %p85
    %p87 = scmp.ne.s32.totalorder %s73, %s74
    %p88 = scmp.eq.s32.totalorder %s14, 1
    %p89 = por %p87, %p88
    %p91 = scmp.ne.s32.totalorder %s74, %s90
    %p92 = scmp.eq.s32.totalorder %s14, 0
    %p93 = por %p91, %p92
    %p94 = scmp.le.s32.totalorder 1, %s8
    %p95 = scmp.lt.s32.totalorder %s8, 3
    %p96 = pnand %p94, %p95
    %p97 = pneg %p96
    // Predicated region
    $region9: #{tpu_custom_call.1} parent=5 // pred_check
      _
    $region10: #{tpu_custom_call.1} parent=5 // pred_check_branch
      %99 = sbr.rel (%p96) target = $region12
    $region11: #{tpu_custom_call.1} parent=5 // pred_region
      %s100 = ssub.s32 %s8, 1
    $region12: #{tpu_custom_call.1} parent=5 // pred_fallthru
      _
    %p101 = scmp.lt.s32.totalorder %s8, 2
    // Predicated region
    $region13: #{tpu_custom_call.1} parent=5 // pred_check
      %p102 = pneg %p101
    $region14: #{tpu_custom_call.1} parent=5 // pred_check_branch
      %104 = sbr.rel (%p102) target = $region16
    $region15: #{tpu_custom_call.1} parent=5 // pred_region
      // Predicated region
      $region17: #{tpu_custom_call.1} parent=15 // pred_check
        %p105 = pneg %p28
      $region18: #{tpu_custom_call.1} parent=15 // pred_check_branch
        %107 = sbr.rel (%p105) target = $region20
      $region19: #{tpu_custom_call.1} parent=15 // pred_region
        %p108 = scmp.lt.s32.totalorder %s8, 1
        %s109 = scalar_select %p108, %s8, 1
        %s110 = smul.addr %s109, 8
        %s111 = scalar_lea.vmem %s0, %s110
      $region20: #{tpu_custom_call.1} parent=15 // pred_fallthru
        _
      // Predicated region
      $region21: #{tpu_custom_call.1} parent=15 // pred_check
        %p112 = pneg %p54
      $region22: #{tpu_custom_call.1} parent=15 // pred_check_branch
        %114 = sbr.rel (%p112) target = $region24
      $region23: #{tpu_custom_call.1} parent=15 // pred_region
        %p115 = scmp.lt.s32.totalorder %s8, 1
        %s116 = scalar_select %p115, %s8, 1
        %s117 = smul.addr %s116, 8
        %s118 = scalar_lea.vmem %s1, %s117
      $region24: #{tpu_custom_call.1} parent=15 // pred_fallthru
        _
    $region16: #{tpu_custom_call.1} parent=5 // pred_fallthru
      _
    %p119 = scmp.le.s32.totalorder 1, %s8
    %p120 = scmp.lt.s32.totalorder %s8, 3
    %p121 = pnand %p119, %p120
    %p122 = pneg %p121
    // Predicated region
    $region25: #{tpu_custom_call.1} parent=5 // pred_check
      _
    $region26: #{tpu_custom_call.1} parent=5 // pred_check_branch
      %124 = sbr.rel (%p121) target = $region28
    $region27: #{tpu_custom_call.1} parent=5 // pred_region
      %s125 = ssub.s32 %s8, 1
      %p126 = scmp.lt.s32.totalorder %s13, 1
      %s127 = scalar_select %p126, %s13, 1
      %s128 = smul.addr %s127, 8
      %s129 = scalar_lea.vmem %s0, %s128
      %p130 = pneg %p34
      %p131 = pneg %p31
      %p132 = scmp.lt.s32.totalorder %s13, 1
      %s133 = scalar_select %p132, %s13, 1
      %s134 = smul.addr %s133, 8
      %s135 = scalar_lea.vmem %s1, %s134
      %p136 = pneg %p60
      %p137 = pneg %p57
      %p138 = pneg %p86
      %p139 = pneg %p83
      %p140 = scmp.lt.s32.totalorder %s13, 1
      %s141 = scalar_select %p140, %s13, 1
      %s142 = smul.addr %s141, 8
      %s143 = scalar_lea.vmem %s2, %s142
      %p144 = scmp.lt.s32.totalorder %s13, 1
      %s145 = scalar_select %p144, %s13, 1
      %s146 = smul.addr %s145, 8
      %s147 = scalar_lea.vmem %s0, %s146
      %p148 = scmp.lt.s32.totalorder %s13, 1
      %s149 = scalar_select %p148, %s13, 1
      %s150 = smul.addr %s149, 8
      %s151 = scalar_lea.vmem %s1, %s150
      %p152 = scmp.lt.s32.totalorder %s13, 1
      %s153 = scalar_select %p152, %s13, 1
      %s154 = smul.addr %s153, 8
      %s155 = scalar_lea.vmem %s2, %s154
      %v156 = vld [vmem:[%s147] sm:$0xff]
      %v157 = vld [vmem:[%s151] sm:$0xff]
      %vm158 = vcmask 130048
      %v159 = vsel %vm158, %v156, -inf
      %160 = vmax.xlane.f32.xlu0 %v159
      %v161 = vpop.xlane.xlu0 %160
      %v162 = vsub.f32 %v156, %v161
      %v163 = vmul.f32 %v162, 1.442695
      %v164 = vpow.pop %v163
      %v165 = vsel %vm158, %v164, 0.0
      %166 = vadd.xlane.f32.xlu0 %v165
      %v167 = vpop.xlane.xlu0 %166
      %v168 = vrcp.pop %v167
      %v169 = vmul.f32 %v164, %v168
      %v170 = vmax.f32 %v169, 1e-07
      %v171 = vlaneseq
      %v172 = vand.u32 %v171, 127
      %173 = vset.pattern.permute.xlu0 0
      %174 = vperm.xlu0 %173, %v157
      %v175 = vpop.permute.xlu0 %174
      %vm176 = vcmp.ne.s32.totalorder %v172, %v175
      %v177 = vsel %vm176, %v170, 0.0
      %v178 = vsel %vm158, %v177, 0.0
      %179 = vadd.xlane.f32.xlu0 %v178
      %v180 = vpop.xlane.xlu0 %179
      %v181 = vmul.f32 %v180, 9.2103405
      %v182 = vlaneseq
      %v183 = vshrl.u32 %v182, 7
      %s184 = smul.u32 %s13, 8
      %v185 = vstv %s184
      %v186 = vadd.s32 %v185, %v183
      %vm187 = vcmp.lt.s32.totalorder %v186, 12
      %v188 = vsel %vm187, %v181, 0.0
      %vm189 = vcmask 7168
      %190 = vst.msk [vmem:[%s155] sm:$0xff] %vm189, %v188
      %p191 = scmp.lt.s32.totalorder %s13, 1
      %s192 = scalar_select %p191, %s13, 1
      %s193 = smul.addr %s192, 8
      %s194 = scalar_lea.vmem %s2, %s193
      // Predicated region
      $region29: #{tpu_custom_call.1} parent=27 // pred_check
        %p195 = pneg %p83
      $region30: #{tpu_custom_call.1} parent=27 // pred_check_branch
        %197 = sbr.rel (%p195) target = $region32
      $region31: #{tpu_custom_call.1} parent=27 // pred_region
        _
      $region32: #{tpu_custom_call.1} parent=27 // pred_fallthru
        _
    $region28: #{tpu_custom_call.1} parent=5 // pred_fallthru
      _
    %p198 = scmp.le.s32.totalorder 2, %s8
    // Predicated region
    $region33: #{tpu_custom_call.1} parent=5 // pred_check
      %p199 = pneg %p198
    $region34: #{tpu_custom_call.1} parent=5 // pred_check_branch
      %201 = sbr.rel (%p199) target = $region36
    $region35: #{tpu_custom_call.1} parent=5 // pred_region
      %s202 = ssub.s32 %s8, 2
      // Predicated region
      $region37: #{tpu_custom_call.1} parent=35 // pred_check
        %p203 = pneg %p89
      $region38: #{tpu_custom_call.1} parent=35 // pred_check_branch
        %205 = sbr.rel (%p203) target = $region40
      $region39: #{tpu_custom_call.1} parent=35 // pred_region
        %p206 = scmp.lt.s32.totalorder %s14, 1
        %s207 = scalar_select %p206, %s14, 1
        %s208 = smul.addr %s207, 8
        %s209 = scalar_lea.vmem %s2, %s208
      $region40: #{tpu_custom_call.1} parent=35 // pred_fallthru
        _
    $region36: #{tpu_custom_call.1} parent=5 // pred_fallthru
      _
  $region6: #{tpu_custom_call.1} parent=0 // loop_footer
    %s12 = sadd.s32 1, %s8
  $region7: #{tpu_custom_call.1} parent=0 // loop_footer_branch
    %7 = sbr.rel target = $region3
  $region8: #{tpu_custom_call.1} parent=0 // loop_exit
    _

</llo_original>
